<compile_context>
chip_gen: v7x
topology: tpu7x:2x2x1
jax: 0.10.0
libtpu: 0.0.40
codegen_flags: <defaults>
</compile_context>

<pallas_src>
import jax
import jax.numpy as jnp
from jax.experimental import pallas as pl
from jax.experimental.pallas import tpu as pltpu


def _h_swish_kernel(x_ref, o_ref):
    x = x_ref[...]
    # h_sigmoid(x) = relu6(x + 3) / 6 ; h_swish(x) = x * h_sigmoid(x)
    hs = jnp.clip(x + 3.0, 0.0, 6.0) * (1.0 / 6.0)
    o_ref[...] = (x * hs).astype(o_ref.dtype)


def _h_swish_jnp(x):
    return x * (jnp.clip(x + 3.0, 0.0, 6.0) * (1.0 / 6.0))


_TINY_THRESHOLD = 64 * 1024            # below this, XLA fusion beats a kernel launch
_TARGET_BLOCK_BYTES = 4 * 1024 * 1024  # ~4 MiB per array per block
_SUBLANE = 32                          # covers f32 / bf16 / int8 sublane packing


def h_swish(x: jax.Array, *, force_pallas: bool = False) -> jax.Array:
    """Elementwise h_swish on an arbitrary-shaped array (e.g. NCHW)."""
    orig_shape = x.shape
    orig_dtype = x.dtype
    total = int(x.size)

    if total == 0:
        return x
    if total < _TINY_THRESHOLD and not force_pallas:
        # Launch + reshape overhead dominates for tiny tensors; let XLA fuse it.
        return _h_swish_jnp(x)

    itemsize = jnp.dtype(orig_dtype).itemsize

    # --- lane-dense 2D slab layout ---------------------------------------
    # Largest LANES in {1024,512,256,128} that divides total (and keeps at
    # least 8 rows) -> no padding pass at all.  Otherwise pad < 128 elements.
    lanes = None
    for cand in (1024, 512, 256, 128):
        if total % cand == 0 and total // cand >= 8:
            lanes = cand
            break
    if lanes is None:
        lanes = 128

    padded_total = lanes * pl.cdiv(total, lanes)
    rows = padded_total // lanes

    flat = x.reshape(-1)
    if padded_total != total:
        # < 128 trailing zeros; h_swish(0) == 0 and the tail is sliced off.
        flat = jnp.pad(flat, (0, padded_total - total))
    x2d = flat.reshape(rows, lanes)

    # --- block sizing: target ~4 MiB per (array, block) -------------------
    tr = _TARGET_BLOCK_BYTES // (lanes * itemsize)
    tr = max(_SUBLANE, (tr // _SUBLANE) * _SUBLANE)
    rows_rounded = _SUBLANE * pl.cdiv(rows, _SUBLANE)
    tr = min(tr, rows_rounded)

    num_blocks = pl.cdiv(rows, tr)
    # Ensure >= 2 blocks so both TensorCores get work on dual-TC chips (v7x).
    if num_blocks < 2 and rows > _SUBLANE:
        tr = _SUBLANE * pl.cdiv(pl.cdiv(rows, 2), _SUBLANE)
        num_blocks = pl.cdiv(rows, tr)

    block_bytes = tr * lanes * itemsize
    # (in + out) x 2 buffers + slack; cap at 32 MiB (v7x scoped default).
    vmem_limit = min(32 * 1024 * 1024,
                     max(16 * 1024 * 1024, 4 * block_bytes + (1 << 20)))

    out2d = pl.pallas_call(
        _h_swish_kernel,
        out_shape=jax.ShapeDtypeStruct((rows, lanes), orig_dtype),
        grid=(num_blocks,),
        in_specs=[pl.BlockSpec((tr, lanes), lambda i: (i, 0))],
        out_specs=pl.BlockSpec((tr, lanes), lambda i: (i, 0)),
        compiler_params=pltpu.CompilerParams(
            dimension_semantics=("parallel",),
            vmem_limit_bytes=vmem_limit,
        ),
        cost_estimate=pl.CostEstimate(
            flops=5 * total,
            transcendentals=0,
            bytes_accessed=2 * total * itemsize,
        ),
    )(x2d)

    out_flat = out2d.reshape(-1)
    if padded_total != total:
        out_flat = out_flat[:total]
    return out_flat.reshape(orig_shape)


if __name__ == "__main__":
    key = jax.random.PRNGKey(0)

    # Small NCHW input matching the module's typical usage.
    x = jax.random.normal(key, (2, 4, 16, 16), dtype=jnp.float32) * 4.0
    ref = x * (jnp.clip(x + 3.0, 0.0, 6.0) / 6.0)

    # Auto dispatch (tiny -> plain jnp path).
    y = jax.block_until_ready(h_swish(x))
    assert y.shape == x.shape and y.dtype == x.dtype
    assert jnp.allclose(y, ref, atol=1e-6, rtol=1e-6), "mismatch (small, auto)"

    # Same input forced through the Pallas kernel path.
    y_k = jax.block_until_ready(h_swish(x, force_pallas=True))
    assert jnp.allclose(y_k, ref, atol=1e-6, rtol=1e-6), "mismatch (small, pallas)"

    # Larger input, cleanly divisible by 1024 -> no padding, multi-block grid.
    x_big = jax.random.normal(jax.random.PRNGKey(1), (4, 32, 56, 56),
                              dtype=jnp.float32) * 4.0
    y_big = jax.block_until_ready(h_swish(x_big))
    ref_big = x_big * (jnp.clip(x_big + 3.0, 0.0, 6.0) / 6.0)
    assert jnp.allclose(y_big, ref_big, atol=1e-6, rtol=1e-6), "mismatch (big)"

    # Ragged size (not a multiple of 128) -> minimal pad + ragged edge block.
    x_rag = jax.random.normal(jax.random.PRNGKey(2), (3, 7, 33, 65),
                              dtype=jnp.float32) * 4.0
    y_rag = jax.block_until_ready(h_swish(x_rag, force_pallas=True))
    ref_rag = x_rag * (jnp.clip(x_rag + 3.0, 0.0, 6.0) / 6.0)
    assert jnp.allclose(y_rag, ref_rag, atol=1e-6, rtol=1e-6), "mismatch (ragged)"

    # bf16 path (checks byte-based block sizing and in-dtype compute).
    x_bf = (jax.random.normal(jax.random.PRNGKey(3), (4, 32, 56, 56),
                              dtype=jnp.float32) * 4.0).astype(jnp.bfloat16)
    y_bf = jax.block_until_ready(h_swish(x_bf))
    ref_bf = x_bf * (jnp.clip(x_bf + 3.0, 0.0, 6.0) * (1.0 / 6.0))
    assert y_bf.dtype == jnp.bfloat16
    assert jnp.allclose(y_bf.astype(jnp.float32), ref_bf.astype(jnp.float32),
                        atol=1e-2, rtol=1e-2), "mismatch (bf16)"

    print("KERNEL_OK")
</pallas_src>

<mosaic_0001>
module attributes {stable_mosaic.version = 11 : i64} {
  func.func @_h_swish_kernel(%arg0: i32, %arg1: memref<32x256xf32, #tpu.memory_space<vmem>>, %arg2: memref<32x256xf32, #tpu.memory_space<vmem>>) attributes {dimension_semantics = [#tpu.dimension_semantics<parallel>], iteration_bounds = array<i64: 1>, scalar_prefetch = 0 : i64, scratch_operands = 0 : i64, tpu.core_type = #tpu.core_type<tc>, window_params = [{transform_indices = @transform_0, window_bounds = array<i64: 32, 256>}, {transform_indices = @transform_1, window_bounds = array<i64: 32, 256>}]} {
    %c0 = arith.constant 0 : index
    %c0_0 = arith.constant 0 : index
    %0 = vector.load %arg1[%c0, %c0_0] : memref<32x256xf32, #tpu.memory_space<vmem>>, vector<32x256xf32>
    %cst = arith.constant 3.000000e+00 : f32
    %1 = vector.broadcast %cst : f32 to vector<32x256xf32>
    %2 = arith.addf %0, %1 : vector<32x256xf32>
    %cst_1 = arith.constant 0.000000e+00 : f32
    %cst_2 = arith.constant 6.000000e+00 : f32
    %3 = vector.broadcast %cst_1 : f32 to vector<32x256xf32>
    %4 = arith.maximumf %3, %2 : vector<32x256xf32>
    %5 = vector.broadcast %cst_2 : f32 to vector<32x256xf32>
    %6 = arith.minimumf %5, %4 : vector<32x256xf32>
    %cst_3 = arith.constant 0.166666672 : f32
    %7 = vector.broadcast %cst_3 : f32 to vector<32x256xf32>
    %8 = arith.mulf %6, %7 : vector<32x256xf32>
    %9 = arith.mulf %0, %8 : vector<32x256xf32>
    %c0_4 = arith.constant 0 : index
    %c0_5 = arith.constant 0 : index
    %10 = vector.load %arg2[%c0_4, %c0_5] : memref<32x256xf32, #tpu.memory_space<vmem>>, vector<32x256xf32>
    tpu.vector_store %arg2[%c0_4, %c0_5], %9 {strides = array<i32>} : memref<32x256xf32, #tpu.memory_space<vmem>>, vector<32x256xf32>,
    return
  }
  func.func @transform_0(%arg0: i32) -> (i32, i32) {
    %c0_i32 = arith.constant 0 : i32
    %c0_i32_0 = arith.constant 0 : i32
    return %arg0, %c0_i32 : i32, i32
  }
  func.func @transform_1(%arg0: i32) -> (i32, i32) {
    %c0_i32 = arith.constant 0 : i32
    %c0_i32_0 = arith.constant 0 : i32
    return %arg0, %c0_i32 : i32, i32
  }
}

</mosaic_0001>

<llo_original>
// kernel: tpu_custom_call.1
$region0: #{tpu_custom_call.1}
  #allocation0 [shape = 'u32[]', space=smem, size = 0x4, offset = 0x4, fixed_abs, tag = 'smem constant byte address 0x4 - core index']
  #allocation1 [shape = 'u32[144,128]{1,0:T(1,128)}', space=vmem, size = 0x12000, scoped, tag = 'internal scratch']
  %s0 = inlined_call_operand.hbm [shape: f32[8,256], index: 0, kind: input, shape index: {}]
  %s1 = inlined_call_operand.hbm [shape: f32[8,256], index: 1, kind: output, shape index: {}]
  %s2 = sld [smem:[#allocation0]]
  $region18: #{tpu_custom_call.1} parent=0
    _
  %s4 = ssub.s32 1, %s2
  %s5 = scalar_select 0, %s4, %s2
  $region1: #{tpu_custom_call.1} parent=0
    #allocation2 [shape = 'u8[32768]{0}', space=vmem, size = 0x8000, scoped, tag = 'input window, operand 0, single buffered']
    #allocation3 [shape = 's32[1]{0}', space=sflag, size = 0x4, scoped, tag = 'scoped memory for tpu_custom_call.1']
    #allocation4 [shape = 's32[1]{0}', space=sflag, size = 0x4, scoped, tag = 'scoped memory for tpu_custom_call.1']
    #allocation5 [shape = 'u8[32768]{0}', space=vmem, size = 0x8000, scoped, tag = 'output window, operand 0, single buffered']
    %6 = vsyncpa [#allocation3], 0
    %7 = vsyncpa [#allocation4], 0
    // Predicated region
    $region2: #{tpu_custom_call.1} parent=1 // pred_check
      _
    $region3: #{tpu_custom_call.1} parent=1 // pred_check_branch
      %9 = sbr.rel (0) target = $region5
    $region4: #{tpu_custom_call.1} parent=1 // pred_region
      %s11 = ssub.s32 1024, 256
      %12 = vsyncadd [#allocation3], %s11
      %s13 = sshll.u32 [#allocation2], 4
      %s14 = int_to_ptr.vmem [resolvable:$true] %s13
      %19 = dma.hbm_to_vmem [thread:$0]  %s0, 256, %s14, [#allocation3], 256, 256, 16
    $region5: #{tpu_custom_call.1} parent=1 // pred_fallthru
      _
    // Predicated region
    $region6: #{tpu_custom_call.1} parent=1 // pred_check
      _
    $region7: #{tpu_custom_call.1} parent=1 // pred_check_branch
      %21 = sbr.rel (0) target = $region9
    $region8: #{tpu_custom_call.1} parent=1 // pred_region
      %22 = dma.done [#allocation3], 1024
    $region9: #{tpu_custom_call.1} parent=1 // pred_fallthru
      _
    %v23 = vld [vmem:[#allocation2] sm:$0xff]
    %v24 = vld [vmem:[#allocation2 + $0x8] sm:$0xff]
    %v25 = vld [vmem:[#allocation2 + $0x10] sm:$0xff]
    %v26 = vld [vmem:[#allocation2 + $0x18] sm:$0xff]
    %v27 = vld [vmem:[#allocation2 + $0x20] sm:$0xff]
    %v28 = vld [vmem:[#allocation2 + $0x28] sm:$0xff]
    %v29 = vld [vmem:[#allocation2 + $0x30] sm:$0xff]
    %v30 = vld [vmem:[#allocation2 + $0x38] sm:$0xff]
    %v31 = vadd.f32 %v23, 3.0
    %v32 = vadd.f32 %v24, 3.0
    %v33 = vadd.f32 %v25, 3.0
    %v34 = vadd.f32 %v26, 3.0
    %v35 = vadd.f32 %v27, 3.0
    %v36 = vadd.f32 %v28, 3.0
    %v37 = vadd.f32 %v29, 3.0
    %v38 = vadd.f32 %v30, 3.0
    %v39 = vmax.f32 %v31, 0.0
    %v40 = vmax.f32 %v32, 0.0
    %v41 = vmax.f32 %v33, 0.0
    %v42 = vmax.f32 %v34, 0.0
    %v43 = vmax.f32 %v35, 0.0
    %v44 = vmax.f32 %v36, 0.0
    %v45 = vmax.f32 %v37, 0.0
    %v46 = vmax.f32 %v38, 0.0
    %v47 = vmin.f32 %v39, 6.0
    %v48 = vmin.f32 %v40, 6.0
    %v49 = vmin.f32 %v41, 6.0
    %v50 = vmin.f32 %v42, 6.0
    %v51 = vmin.f32 %v43, 6.0
    %v52 = vmin.f32 %v44, 6.0
    %v53 = vmin.f32 %v45, 6.0
    %v54 = vmin.f32 %v46, 6.0
    %v55 = vmul.f32 %v47, 0.16666667
    %v56 = vmul.f32 %v48, 0.16666667
    %v57 = vmul.f32 %v49, 0.16666667
    %v58 = vmul.f32 %v50, 0.16666667
    %v59 = vmul.f32 %v51, 0.16666667
    %v60 = vmul.f32 %v52, 0.16666667
    %v61 = vmul.f32 %v53, 0.16666667
    %v62 = vmul.f32 %v54, 0.16666667
    %v63 = vmul.f32 %v23, %v55
    %v64 = vmul.f32 %v24, %v56
    %v65 = vmul.f32 %v25, %v57
    %v66 = vmul.f32 %v26, %v58
    %v67 = vmul.f32 %v27, %v59
    %v68 = vmul.f32 %v28, %v60
    %v69 = vmul.f32 %v29, %v61
    %v70 = vmul.f32 %v30, %v62
    %71 = vst [vmem:[#allocation5] sm:$0xff] %v63
    %72 = vst [vmem:[#allocation5 + $0x8] sm:$0xff] %v64
    %73 = vst [vmem:[#allocation5 + $0x10] sm:$0xff] %v65
    %74 = vst [vmem:[#allocation5 + $0x18] sm:$0xff] %v66
    %75 = vst [vmem:[#allocation5 + $0x20] sm:$0xff] %v67
    %76 = vst [vmem:[#allocation5 + $0x28] sm:$0xff] %v68
    %77 = vst [vmem:[#allocation5 + $0x30] sm:$0xff] %v69
    %78 = vst [vmem:[#allocation5 + $0x38] sm:$0xff] %v70
    // Predicated region
    $region10: #{tpu_custom_call.1} parent=1 // pred_check
      _
    $region11: #{tpu_custom_call.1} parent=1 // pred_check_branch
      %80 = sbr.rel (0) target = $region13
    $region12: #{tpu_custom_call.1} parent=1 // pred_region
      %s82 = ssub.s32 1024, 256
      %83 = vsyncadd [#allocation4], %s82
      %s84 = sshll.u32 [#allocation5], 4
      %s85 = int_to_ptr.vmem [resolvable:$true] %s84
      %90 = dma.vmem_to_hbm [thread:$0]  %s85, 256, %s1, [#allocation4], 256, 256, 16
    $region13: #{tpu_custom_call.1} parent=1 // pred_fallthru
      _
    // Predicated region
    $region14: #{tpu_custom_call.1} parent=1 // pred_check
      _
    $region15: #{tpu_custom_call.1} parent=1 // pred_check_branch
      %92 = sbr.rel (0) target = $region17
    $region16: #{tpu_custom_call.1} parent=1 // pred_region
      %93 = dma.done [#allocation4], 1024
    $region17: #{tpu_custom_call.1} parent=1 // pred_fallthru
      _
    %94 = vsyncpa [#allocation3], 1
    %95 = vsyncpa [#allocation4], 1

</llo_original>
